<compile_context>
chip_gen: v7x
topology: tpu7x:2x2x1
jax: 0.10.0
libtpu: 0.0.40
codegen_flags: <defaults>
</compile_context>

<pallas_src>
import functools

import jax
import jax.numpy as jnp
from jax.experimental import pallas as pl
from jax.experimental.pallas import tpu as pltpu

PADDING_IDX = 0


def _round_up(x, m):
    return (x + m - 1) // m * m


def _nbow_kernel(idx_ref, w_ref, emb_ref, out_ref, scaled_ref, *, batch_chunk):
    # idx_ref:    (block_b, S)        int32
    # w_ref:      (1, block_v)        f32   (w[padding_idx] and padded vocab = 0)
    # emb_ref:    (block_v, D_pad)    bf16
    # out_ref:    (block_b, D_pad)    f32   (resident across the vocab grid axis)
    # scaled_ref: (block_b, block_v)  bf16  VMEM scratch (weighted one-hot counts)
    vi = pl.program_id(1)

    @pl.when(vi == 0)
    def _init():
        out_ref[...] = jnp.zeros_like(out_ref)

    block_b, seq_len = idx_ref.shape
    block_v = w_ref.shape[1]
    v_base = vi * block_v
    n_chunks = block_b // batch_chunk

    # Hoisted out of the (unrolled) chunk loop: JAX does not CSE
    # broadcast_in_dim, so building the iota once matters.
    iota_v = jax.lax.broadcasted_iota(
        jnp.int32, (batch_chunk, seq_len, block_v), 2) + v_base        # (BC,S,bV)
    w_row = w_ref[...]                                                 # (1, bV) f32

    def chunk_body(c, carry):
        b0 = pl.multiple_of(c * batch_chunk, batch_chunk)
        idx_c = idx_ref[pl.ds(b0, batch_chunk), :]                     # (BC, S)
        onehot = (idx_c[:, :, None] == iota_v).astype(jnp.float32)     # (BC, S, bV)
        counts = jnp.sum(onehot, axis=1)                               # (BC, bV)
        scaled_ref[pl.ds(b0, batch_chunk), :] = (
            counts * w_row).astype(jnp.bfloat16)
        return carry

    jax.lax.fori_loop(0, n_chunks, chunk_body, 0, unroll=True)

    # One full-block MXU matmul per (batch, vocab) tile; f32 accumulation into
    # the resident output block.
    out_ref[...] += jnp.dot(
        scaled_ref[...], emb_ref[...], preferred_element_type=jnp.float32
    )


def nbow_forward(idxs, token_weights, embedding_table, *, padding_idx=PADDING_IDX,
                 block_b=128, block_v=512, batch_chunk=16):
    """idxs: [B, S] int; token_weights: [V] f32; embedding_table: [V, D] f32."""
    B, S = idxs.shape
    V, D = embedding_table.shape
    assert token_weights.shape == (V,)

    # Fold the padding mask into the token weights (mask^2 == mask).
    w = token_weights.astype(jnp.float32).at[padding_idx].set(0.0)

    # Tile / pad sizes (batch tile a multiple of 16 for aligned bf16 scratch rows).
    block_b = min(block_b, _round_up(B, 16))
    B_pad = _round_up(B, block_b)
    block_v = min(block_v, _round_up(V, 128))
    V_pad = _round_up(V, block_v)
    D_pad = _round_up(D, 128)            # lane-dense output / RHS stores
    batch_chunk = min(batch_chunk, block_b)
    assert block_b % batch_chunk == 0

    # Pad inputs (padded batch rows use padding_idx -> contribute exactly zero;
    # padded vocab rows/cols have zero weight/embedding and are sliced off).
    idx_p = jnp.pad(idxs.astype(jnp.int32), ((0, B_pad - B), (0, 0)),
                    constant_values=padding_idx)
    w_p = jnp.pad(w, (0, V_pad - V)).reshape(1, V_pad)
    emb_p = jnp.pad(embedding_table.astype(jnp.bfloat16),
                    ((0, V_pad - V), (0, D_pad - D)))

    grid = (B_pad // block_b, V_pad // block_v)
    kernel = functools.partial(_nbow_kernel, batch_chunk=batch_chunk)

    n_b_tiles = grid[0]
    cost = pl.CostEstimate(
        flops=int(2 * B_pad * V_pad * D_pad + 2 * B_pad * S * V_pad),
        transcendentals=0,
        bytes_accessed=int(idx_p.size * 4 + B_pad * D_pad * 4
                           + n_b_tiles * (emb_p.size * 2 + w_p.size * 4)),
    )

    out = pl.pallas_call(
        kernel,
        out_shape=jax.ShapeDtypeStruct((B_pad, D_pad), jnp.float32),
        grid_spec=pltpu.PrefetchScalarGridSpec(
            num_scalar_prefetch=0,
            grid=grid,
            in_specs=[
                pl.BlockSpec((block_b, S), lambda i, v: (i, 0)),        # idx tile
                pl.BlockSpec((1, block_v), lambda i, v: (0, v)),        # weights tile
                pl.BlockSpec((block_v, D_pad), lambda i, v: (v, 0)),    # emb tile
            ],
            out_specs=pl.BlockSpec((block_b, D_pad), lambda i, v: (i, 0)),
            scratch_shapes=[pltpu.VMEM((block_b, block_v), jnp.bfloat16)],
        ),
        compiler_params=pltpu.CompilerParams(
            dimension_semantics=("parallel", "arbitrary"),
        ),
        cost_estimate=cost,
    )(idx_p, w_p, emb_p)

    return out[:B, :D]


def nbow_reference(idxs, token_weights, embedding_table, padding_idx=PADDING_IDX):
    mask = (idxs != padding_idx).astype(jnp.float32)
    embs = embedding_table[idxs] * mask[..., None]
    tw = token_weights[idxs] * mask
    return jnp.einsum("ijk,ij->ik", embs, tw)


if __name__ == "__main__":
    B, S, V, D = 16, 16, 256, 64

    key = jax.random.PRNGKey(0)
    k_idx, k_emb, k_w = jax.random.split(key, 3)

    # Token ids in [0, V); index 0 is the padding index (some tokens mask out).
    idxs = jax.random.randint(k_idx, (B, S), 0, V, dtype=jnp.int32)
    embedding_table = jax.random.normal(k_emb, (V, D), dtype=jnp.float32)
    token_weights = jax.random.uniform(
        k_w, (V,), dtype=jnp.float32, minval=0.05, maxval=1.0
    )

    out = nbow_forward(idxs, token_weights, embedding_table)
    out = jax.block_until_ready(out)

    ref = nbow_reference(idxs, token_weights, embedding_table)
    assert out.shape == (B, D)
    # bf16 matmul operands with f32 accumulation -> ~1e-2 relative difference
    # vs. the all-f32 reference; tolerance loosened accordingly.
    assert jnp.allclose(out, ref, atol=5e-2, rtol=5e-2), "mismatch vs reference"

    print("KERNEL_OK")
</pallas_src>

<mosaic_0001>
module attributes {stable_mosaic.version = 11 : i64} {
  func.func @_nbow_kernel(%arg0: i32, %arg1: i32, %arg2: memref<16x16xi32, #tpu.memory_space<vmem>>, %arg3: memref<1x256xf32, #tpu.memory_space<vmem>>, %arg4: memref<256x128xbf16, #tpu.memory_space<vmem>>, %arg5: memref<16x128xf32, #tpu.memory_space<vmem>>, %arg6: memref<16x256xbf16, #tpu.memory_space<vmem>>) attributes {dimension_semantics = [#tpu.dimension_semantics<parallel>, #tpu.dimension_semantics<arbitrary>], iteration_bounds = array<i64: 1, 1>, scalar_prefetch = 0 : i64, scratch_operands = 1 : i64, tpu.core_type = #tpu.core_type<tc>, window_params = [{transform_indices = @transform_0, window_bounds = array<i64: 16, 16>}, {transform_indices = @transform_1, window_bounds = array<i64: 1, 256>}, {transform_indices = @transform_2, window_bounds = array<i64: 256, 128>}, {transform_indices = @transform_3, window_bounds = array<i64: 16, 128>}]} {
    %c0_i32 = arith.constant 0 : i32
    %0 = arith.cmpi eq, %arg1, %c0_i32 : i32
    %1 = arith.extui %0 : i1 to i32
    %c0_i32_0 = arith.constant 0 : i32
    %2 = arith.cmpi ne, %1, %c0_i32_0 : i32
    scf.if %2 {
      %cst_14 = arith.constant 0.000000e+00 : f32
      %29 = vector.broadcast %cst_14 : f32 to vector<16x128xf32>
      %c0_15 = arith.constant 0 : index
      %c0_16 = arith.constant 0 : index
      %30 = vector.load %arg5[%c0_15, %c0_16] : memref<16x128xf32, #tpu.memory_space<vmem>>, vector<16x128xf32>
      tpu.vector_store %arg5[%c0_15, %c0_16], %29 {strides = array<i32>} : memref<16x128xf32, #tpu.memory_space<vmem>>, vector<16x128xf32>,
    } else {
    }
    %c256_i32 = arith.constant 256 : i32
    %3 = arith.muli %arg1, %c256_i32 : i32
    %4 = tpu.iota {dimensions = array<i32: 2>} : vector<16x16x256xi32>
    %5 = vector.broadcast %3 : i32 to vector<16x16x256xi32>
    %6 = arith.addi %4, %5 : vector<16x16x256xi32>
    %c0 = arith.constant 0 : index
    %c0_1 = arith.constant 0 : index
    %7 = vector.load %arg3[%c0, %c0_1] : memref<1x256xf32, #tpu.memory_space<vmem>>, vector<1x256xf32>
    %c0_i32_2 = arith.constant 0 : i32
    %c16_i32 = arith.constant 16 : i32
    %8 = arith.muli %c0_i32_2, %c16_i32 : i32
    %9 = tpu.assume_multiple %8, 16 : i32
    %10 = arith.index_cast %9 : i32 to index
    %c0_3 = arith.constant 0 : index
    %11 = vector.load %arg2[%10, %c0_3] : memref<16x16xi32, #tpu.memory_space<vmem>>, vector<16x16xi32>
    %12 = vector.shape_cast %11 : vector<16x16xi32> to vector<16x16x1xi32>
    %13 = vector.broadcast %12 : vector<16x16x1xi32> to vector<16x16x256xi32>
    %14 = arith.cmpi eq, %13, %6 : vector<16x16x256xi32>
    %15 = arith.extui %14 : vector<16x16x256xi1> to vector<16x16x256xi32>
    %16 = arith.sitofp %15 : vector<16x16x256xi32> to vector<16x16x256xf32>
    %cst = arith.constant dense<0.000000e+00> : vector<16x256xf32>
    %17 = vector.multi_reduction <add>, %16, %cst [1] : vector<16x16x256xf32> to vector<16x256xf32>
    %18 = vector.broadcast %7 : vector<1x256xf32> to vector<16x256xf32>
    %19 = arith.mulf %17, %18 : vector<16x256xf32>
    %20 = arith.truncf %19 : vector<16x256xf32> to vector<16x256xbf16>
    %21 = arith.index_cast %9 : i32 to index
    %c0_4 = arith.constant 0 : index
    %22 = vector.load %arg6[%21, %c0_4] : memref<16x256xbf16, #tpu.memory_space<vmem>>, vector<16x256xbf16>
    tpu.vector_store %arg6[%21, %c0_4], %20 {strides = array<i32>} : memref<16x256xbf16, #tpu.memory_space<vmem>>, vector<16x256xbf16>,
    %c1_i32 = arith.constant 1 : i32
    %c0_5 = arith.constant 0 : index
    %c0_6 = arith.constant 0 : index
    %23 = vector.load %arg5[%c0_5, %c0_6] : memref<16x128xf32, #tpu.memory_space<vmem>>, vector<16x128xf32>
    %c0_7 = arith.constant 0 : index
    %c0_8 = arith.constant 0 : index
    %24 = vector.load %arg6[%c0_7, %c0_8] : memref<16x256xbf16, #tpu.memory_space<vmem>>, vector<16x256xbf16>
    %c0_9 = arith.constant 0 : index
    %c0_10 = arith.constant 0 : index
    %25 = vector.load %arg4[%c0_9, %c0_10] : memref<256x128xbf16, #tpu.memory_space<vmem>>, vector<256x128xbf16>
    %cst_11 = arith.constant dense<0.000000e+00> : vector<16x128xf32>
    %26 = tpu.matmul %24, %25, %cst_11 {dimension_numbers = #tpu.dot_dimension_numbers<[1], [0], [0], [1], [0, 0, 1, 1], [], []>} : vector<16x256xbf16>, vector<256x128xbf16>, vector<16x128xf32> -> vector<16x128xf32>
    %27 = arith.addf %23, %26 : vector<16x128xf32>
    %c0_12 = arith.constant 0 : index
    %c0_13 = arith.constant 0 : index
    %28 = vector.load %arg5[%c0_12, %c0_13] : memref<16x128xf32, #tpu.memory_space<vmem>>, vector<16x128xf32>
    tpu.vector_store %arg5[%c0_12, %c0_13], %27 {strides = array<i32>} : memref<16x128xf32, #tpu.memory_space<vmem>>, vector<16x128xf32>,
    return
  }
  func.func @transform_0(%arg0: i32, %arg1: i32) -> (i32, i32) {
    %c0_i32 = arith.constant 0 : i32
    %c0_i32_0 = arith.constant 0 : i32
    return %arg0, %c0_i32 : i32, i32
  }
  func.func @transform_1(%arg0: i32, %arg1: i32) -> (i32, i32) {
    %c0_i32 = arith.constant 0 : i32
    %c0_i32_0 = arith.constant 0 : i32
    return %c0_i32, %arg1 : i32, i32
  }
  func.func @transform_2(%arg0: i32, %arg1: i32) -> (i32, i32) {
    %c0_i32 = arith.constant 0 : i32
    %c0_i32_0 = arith.constant 0 : i32
    return %arg1, %c0_i32 : i32, i32
  }
  func.func @transform_3(%arg0: i32, %arg1: i32) -> (i32, i32) {
    %c0_i32 = arith.constant 0 : i32
    %c0_i32_0 = arith.constant 0 : i32
    return %arg0, %c0_i32 : i32, i32
  }
}

</mosaic_0001>

<llo_original>
// kernel: tpu_custom_call.1
$region0: #{tpu_custom_call.1}
  #allocation0 [shape = 'u32[]', space=smem, size = 0x4, offset = 0x4, fixed_abs, tag = 'smem constant byte address 0x4 - core index']
  #allocation1 [shape = 'u32[144,128]{1,0:T(1,128)}', space=vmem, size = 0x12000, scoped, tag = 'internal scratch']
  #allocation2 [shape = 'bf16[16,256]{1,0:T(16,128)(2,1)}', space=vmem, size = 0x2000, scoped, tag = 'scratch operand']
  %s0 = inlined_call_operand.hbm [shape: s32[16,16], index: 0, kind: input, shape index: {}]
  %s1 = inlined_call_operand.vmem [shape: f32[1,256], index: 1, kind: input, shape index: {}]
  %s2 = inlined_call_operand.hbm [shape: bf16[256,128], index: 2, kind: input, shape index: {}]
  %s3 = inlined_call_operand.hbm [shape: f32[16,128], index: 3, kind: output, shape index: {}]
  %s4 = sld [smem:[#allocation0]]
  $region34: #{tpu_custom_call.1} parent=0
    _
  %s6 = ssub.s32 1, %s4
  %s7 = scalar_select 0, %s6, %s4
  $region1: #{tpu_custom_call.1} parent=0
    #allocation3 [shape = 'u8[8192]{0}', space=vmem, size = 0x2000, scoped, tag = 'input window, operand 0, single buffered']
    #allocation4 [shape = 's32[1]{0}', space=sflag, size = 0x4, scoped, tag = 'scoped memory for tpu_custom_call.1']
    #allocation5 [shape = 's32[1]{0}', space=sflag, size = 0x4, scoped, tag = 'scoped memory for tpu_custom_call.1']
    #allocation6 [shape = 'u8[65536]{0}', space=vmem, size = 0x10000, scoped, tag = 'input window, operand 2, single buffered']
    #allocation7 [shape = 's32[1]{0}', space=sflag, size = 0x4, scoped, tag = 'scoped memory for tpu_custom_call.1']
    #allocation8 [shape = 'u8[8192]{0}', space=vmem, size = 0x2000, scoped, tag = 'output window, operand 0, single buffered']
    %8 = vsyncpa [#allocation4], 0
    %9 = vsyncpa [#allocation7], 0
    %10 = vsyncpa [#allocation5], 0
    // Predicated region
    $region2: #{tpu_custom_call.1} parent=1 // pred_check
      _
    $region3: #{tpu_custom_call.1} parent=1 // pred_check_branch
      %12 = sbr.rel (0) target = $region5
    $region4: #{tpu_custom_call.1} parent=1 // pred_region
      %s14 = ssub.s32 256, 256
      %15 = vsyncadd [#allocation4], %s14
      %s16 = sshll.u32 [#allocation3], 4
      %s17 = int_to_ptr.vmem [resolvable:$true] %s16
      %22 = dma.hbm_to_vmem [thread:$0]  %s0, 256, %s17, [#allocation4], 128, 128, 8
    $region5: #{tpu_custom_call.1} parent=1 // pred_fallthru
      _
    // Predicated region
    $region6: #{tpu_custom_call.1} parent=1 // pred_check
      _
    $region7: #{tpu_custom_call.1} parent=1 // pred_check_branch
      %24 = sbr.rel (0) target = $region9
    $region8: #{tpu_custom_call.1} parent=1 // pred_region
      _
    $region9: #{tpu_custom_call.1} parent=1 // pred_fallthru
      _
    // Predicated region
    $region10: #{tpu_custom_call.1} parent=1 // pred_check
      _
    $region11: #{tpu_custom_call.1} parent=1 // pred_check_branch
      %26 = sbr.rel (0) target = $region13
    $region12: #{tpu_custom_call.1} parent=1 // pred_region
      %s28 = ssub.s32 2048, 2048
      %29 = vsyncadd [#allocation7], %s28
      %s30 = sshll.u32 [#allocation6], 4
      %s31 = int_to_ptr.vmem [resolvable:$true] %s30
      %36 = dma.hbm_to_vmem [thread:$0]  %s2, 2048, %s31, [#allocation7], 64, 64, 4
    $region13: #{tpu_custom_call.1} parent=1 // pred_fallthru
      _
    // Predicated region
    $region14: #{tpu_custom_call.1} parent=1 // pred_check
      _
    $region15: #{tpu_custom_call.1} parent=1 // pred_check_branch
      %38 = sbr.rel (0) target = $region17
    $region16: #{tpu_custom_call.1} parent=1 // pred_region
      %39 = dma.done [#allocation4], 256
    $region17: #{tpu_custom_call.1} parent=1 // pred_fallthru
      _
    // Predicated region
    $region18: #{tpu_custom_call.1} parent=1 // pred_check
      _
    $region19: #{tpu_custom_call.1} parent=1 // pred_check_branch
      %41 = sbr.rel (0) target = $region21
    $region20: #{tpu_custom_call.1} parent=1 // pred_region
      %42 = dma.done [#allocation7], 2048
    $region21: #{tpu_custom_call.1} parent=1 // pred_fallthru
      _
    %p44 = scmp.eq.s32.totalorder 0, 0
    // Predicated region
    $region22: #{tpu_custom_call.1} parent=1 // pred_check
      %p45 = pneg %p44
    $region23: #{tpu_custom_call.1} parent=1 // pred_check_branch
      %47 = sbr.rel (%p45) target = $region25
    $region24: #{tpu_custom_call.1} parent=1 // pred_region
      %48 = vst [vmem:[#allocation8] sm:$0xff] 0.0
      %49 = vst [vmem:[#allocation8 + $0x8] sm:$0xff] 0.0
    $region25: #{tpu_custom_call.1} parent=1 // pred_fallthru
      _
    %s50 = smul.u32 0, 256
    %v51 = vlaneseq
    %v52 = vand.u32 %v51, 127
    %v53 = vadd.s32 %v52, 128
    %v54 = vstv %s50
    %v55 = vadd.s32 %v52, %v54
    %v56 = vadd.s32 %v53, %v54
    %v57 = vld [vmem:[%s1] sm:$0x3]
    %v58 = vld [vmem:[#allocation3] sm:$0xff]
    %v59 = vld [vmem:[#allocation3 + $0x8] sm:$0xff]
    %v60 = vlaneseq
    %v61 = vshrl.u32 %v60, 7
    %v62 = vsub.s32 0, %v61
    %v63 = vrot.slane %v58, %v62
    %65 = vbcast.lane.b32.xlu0 %v63, 256
    %v66 = vpop.permute.xlu0 %65
    %s68 = sor.u32 256, 8
    %69 = vbcast.lane.b32.xlu0 %v63, %s68
    %v70 = vpop.permute.xlu0 %69
    %v71 = vlaneseq
    %v72 = vshrl.u32 %v71, 7
    %v73 = vsub.s32 1, %v72
    %v74 = vrot.slane %v58, %v73
    %76 = vbcast.lane.b32.xlu0 %v74, 256
    %v77 = vpop.permute.xlu0 %76
    %s79 = sor.u32 256, 8
    %80 = vbcast.lane.b32.xlu0 %v74, %s79
    %v81 = vpop.permute.xlu0 %80
    %v82 = vlaneseq
    %v83 = vshrl.u32 %v82, 7
    %v84 = vsub.s32 2, %v83
    %v85 = vrot.slane %v58, %v84
    %87 = vbcast.lane.b32.xlu0 %v85, 256
    %v88 = vpop.permute.xlu0 %87
    %s90 = sor.u32 256, 8
    %91 = vbcast.lane.b32.xlu0 %v85, %s90
    %v92 = vpop.permute.xlu0 %91
    %v93 = vlaneseq
    %v94 = vshrl.u32 %v93, 7
    %v95 = vsub.s32 3, %v94
    %v96 = vrot.slane %v58, %v95
    %98 = vbcast.lane.b32.xlu0 %v96, 256
    %v99 = vpop.permute.xlu0 %98
    %s101 = sor.u32 256, 8
    %102 = vbcast.lane.b32.xlu0 %v96, %s101
    %v103 = vpop.permute.xlu0 %102
    %v104 = vlaneseq
    %v105 = vshrl.u32 %v104, 7
    %v106 = vsub.s32 4, %v105
    %v107 = vrot.slane %v58, %v106
    %109 = vbcast.lane.b32.xlu0 %v107, 256
    %v110 = vpop.permute.xlu0 %109
    %s112 = sor.u32 256, 8
    %113 = vbcast.lane.b32.xlu0 %v107, %s112
    %v114 = vpop.permute.xlu0 %113
    %v115 = vlaneseq
    %v116 = vshrl.u32 %v115, 7
    %v117 = vsub.s32 5, %v116
    %v118 = vrot.slane %v58, %v117
    %120 = vbcast.lane.b32.xlu0 %v118, 256
    %v121 = vpop.permute.xlu0 %120
    %s123 = sor.u32 256, 8
    %124 = vbcast.lane.b32.xlu0 %v118, %s123
    %v125 = vpop.permute.xlu0 %124
    %v126 = vlaneseq
    %v127 = vshrl.u32 %v126, 7
    %v128 = vsub.s32 6, %v127
    %v129 = vrot.slane %v58, %v128
    %131 = vbcast.lane.b32.xlu0 %v129, 256
    %v132 = vpop.permute.xlu0 %131
    %s134 = sor.u32 256, 8
    %135 = vbcast.lane.b32.xlu0 %v129, %s134
    %v136 = vpop.permute.xlu0 %135
    %v137 = vlaneseq
    %v138 = vshrl.u32 %v137, 7
    %v139 = vsub.s32 7, %v138
    %v140 = vrot.slane %v58, %v139
    %142 = vbcast.lane.b32.xlu0 %v140, 256
    %v143 = vpop.permute.xlu0 %142
    %s145 = sor.u32 256, 8
    %146 = vbcast.lane.b32.xlu0 %v140, %s145
    %v147 = vpop.permute.xlu0 %146
    %v148 = vlaneseq
    %v149 = vshrl.u32 %v148, 7
    %v150 = vsub.s32 0, %v149
    %v151 = vrot.slane %v59, %v150
    %153 = vbcast.lane.b32.xlu0 %v151, 256
    %v154 = vpop.permute.xlu0 %153
    %s156 = sor.u32 256, 8
    %157 = vbcast.lane.b32.xlu0 %v151, %s156
    %v158 = vpop.permute.xlu0 %157
    %v159 = vlaneseq
    %v160 = vshrl.u32 %v159, 7
    %v161 = vsub.s32 1, %v160
    %v162 = vrot.slane %v59, %v161
    %164 = vbcast.lane.b32.xlu0 %v162, 256
    %v165 = vpop.permute.xlu0 %164
    %s167 = sor.u32 256, 8
    %168 = vbcast.lane.b32.xlu0 %v162, %s167
    %v169 = vpop.permute.xlu0 %168
    %v170 = vlaneseq
    %v171 = vshrl.u32 %v170, 7
    %v172 = vsub.s32 2, %v171
    %v173 = vrot.slane %v59, %v172
    %175 = vbcast.lane.b32.xlu0 %v173, 256
    %v176 = vpop.permute.xlu0 %175
    %s178 = sor.u32 256, 8
    %179 = vbcast.lane.b32.xlu0 %v173, %s178
    %v180 = vpop.permute.xlu0 %179
    %v181 = vlaneseq
    %v182 = vshrl.u32 %v181, 7
    %v183 = vsub.s32 3, %v182
    %v184 = vrot.slane %v59, %v183
    %186 = vbcast.lane.b32.xlu0 %v184, 256
    %v187 = vpop.permute.xlu0 %186
    %s189 = sor.u32 256, 8
    %190 = vbcast.lane.b32.xlu0 %v184, %s189
    %v191 = vpop.permute.xlu0 %190
    %v192 = vlaneseq
    %v193 = vshrl.u32 %v192, 7
    %v194 = vsub.s32 4, %v193
    %v195 = vrot.slane %v59, %v194
    %197 = vbcast.lane.b32.xlu0 %v195, 256
    %v198 = vpop.permute.xlu0 %197
    %s200 = sor.u32 256, 8
    %201 = vbcast.lane.b32.xlu0 %v195, %s200
    %v202 = vpop.permute.xlu0 %201
    %v203 = vlaneseq
    %v204 = vshrl.u32 %v203, 7
    %v205 = vsub.s32 5, %v204
    %v206 = vrot.slane %v59, %v205
    %208 = vbcast.lane.b32.xlu0 %v206, 256
    %v209 = vpop.permute.xlu0 %208
    %s211 = sor.u32 256, 8
    %212 = vbcast.lane.b32.xlu0 %v206, %s211
    %v213 = vpop.permute.xlu0 %212
    %v214 = vlaneseq
    %v215 = vshrl.u32 %v214, 7
    %v216 = vsub.s32 6, %v215
    %v217 = vrot.slane %v59, %v216
    %219 = vbcast.lane.b32.xlu0 %v217, 256
    %v220 = vpop.permute.xlu0 %219
    %s222 = sor.u32 256, 8
    %223 = vbcast.lane.b32.xlu0 %v217, %s222
    %v224 = vpop.permute.xlu0 %223
    %v225 = vlaneseq
    %v226 = vshrl.u32 %v225, 7
    %v227 = vsub.s32 7, %v226
    %v228 = vrot.slane %v59, %v227
    %230 = vbcast.lane.b32.xlu0 %v228, 256
    %v231 = vpop.permute.xlu0 %230
    %s233 = sor.u32 256, 8
    %234 = vbcast.lane.b32.xlu0 %v228, %s233
    %v235 = vpop.permute.xlu0 %234
    %vm236 = vcmp.eq.s32.totalorder %v66, %v55
    %vm237 = vcmp.eq.s32.totalorder %v66, %v56
    %vm238 = vcmp.eq.s32.totalorder %v70, %v55
    %vm239 = vcmp.eq.s32.totalorder %v70, %v56
    %vm240 = vcmp.eq.s32.totalorder %v77, %v55
    %vm241 = vcmp.eq.s32.totalorder %v77, %v56
    %vm242 = vcmp.eq.s32.totalorder %v81, %v55
    %vm243 = vcmp.eq.s32.totalorder %v81, %v56
    %vm244 = vcmp.eq.s32.totalorder %v88, %v55
    %vm245 = vcmp.eq.s32.totalorder %v88, %v56
    %vm246 = vcmp.eq.s32.totalorder %v92, %v55
    %vm247 = vcmp.eq.s32.totalorder %v92, %v56
    %vm248 = vcmp.eq.s32.totalorder %v99, %v55
    %vm249 = vcmp.eq.s32.totalorder %v99, %v56
    %vm250 = vcmp.eq.s32.totalorder %v103, %v55
    %vm251 = vcmp.eq.s32.totalorder %v103, %v56
    %vm252 = vcmp.eq.s32.totalorder %v110, %v55
    %vm253 = vcmp.eq.s32.totalorder %v110, %v56
    %vm254 = vcmp.eq.s32.totalorder %v114, %v55
    %vm255 = vcmp.eq.s32.totalorder %v114, %v56
    %vm256 = vcmp.eq.s32.totalorder %v121, %v55
    %vm257 = vcmp.eq.s32.totalorder %v121, %v56
    %vm258 = vcmp.eq.s32.totalorder %v125, %v55
    %vm259 = vcmp.eq.s32.totalorder %v125, %v56
    %vm260 = vcmp.eq.s32.totalorder %v132, %v55
    %vm261 = vcmp.eq.s32.totalorder %v132, %v56
    %vm262 = vcmp.eq.s32.totalorder %v136, %v55
    %vm263 = vcmp.eq.s32.totalorder %v136, %v56
    %vm264 = vcmp.eq.s32.totalorder %v143, %v55
    %vm265 = vcmp.eq.s32.totalorder %v143, %v56
    %vm266 = vcmp.eq.s32.totalorder %v147, %v55
    %vm267 = vcmp.eq.s32.totalorder %v147, %v56
    %vm268 = vcmp.eq.s32.totalorder %v154, %v55
    %vm269 = vcmp.eq.s32.totalorder %v154, %v56
    %vm270 = vcmp.eq.s32.totalorder %v158, %v55
    %vm271 = vcmp.eq.s32.totalorder %v158, %v56
    %vm272 = vcmp.eq.s32.totalorder %v165, %v55
    %vm273 = vcmp.eq.s32.totalorder %v165, %v56
    %vm274 = vcmp.eq.s32.totalorder %v169, %v55
    %vm275 = vcmp.eq.s32.totalorder %v169, %v56
    %vm276 = vcmp.eq.s32.totalorder %v176, %v55
    %vm277 = vcmp.eq.s32.totalorder %v176, %v56
    %vm278 = vcmp.eq.s32.totalorder %v180, %v55
    %vm279 = vcmp.eq.s32.totalorder %v180, %v56
    %vm280 = vcmp.eq.s32.totalorder %v187, %v55
    %vm281 = vcmp.eq.s32.totalorder %v187, %v56
    %vm282 = vcmp.eq.s32.totalorder %v191, %v55
    %vm283 = vcmp.eq.s32.totalorder %v191, %v56
    %vm284 = vcmp.eq.s32.totalorder %v198, %v55
    %vm285 = vcmp.eq.s32.totalorder %v198, %v56
    %vm286 = vcmp.eq.s32.totalorder %v202, %v55
    %vm287 = vcmp.eq.s32.totalorder %v202, %v56
    %vm288 = vcmp.eq.s32.totalorder %v209, %v55
    %vm289 = vcmp.eq.s32.totalorder %v209, %v56
    %vm290 = vcmp.eq.s32.totalorder %v213, %v55
    %vm291 = vcmp.eq.s32.totalorder %v213, %v56
    %vm292 = vcmp.eq.s32.totalorder %v220, %v55
    %vm293 = vcmp.eq.s32.totalorder %v220, %v56
    %vm294 = vcmp.eq.s32.totalorder %v224, %v55
    %vm295 = vcmp.eq.s32.totalorder %v224, %v56
    %vm296 = vcmp.eq.s32.totalorder %v231, %v55
    %vm297 = vcmp.eq.s32.totalorder %v231, %v56
    %vm298 = vcmp.eq.s32.totalorder %v235, %v55
    %vm299 = vcmp.eq.s32.totalorder %v235, %v56
    %v300 = vsel %vm236, 1, 0
    %v301 = vsel %vm237, 1, 0
    %v302 = vsel %vm238, 1, 0
    %v303 = vsel %vm239, 1, 0
    %v304 = vsel %vm240, 1, 0
    %v305 = vsel %vm241, 1, 0
    %v306 = vsel %vm242, 1, 0
    %v307 = vsel %vm243, 1, 0
    %v308 = vsel %vm244, 1, 0
    %v309 = vsel %vm245, 1, 0
    %v310 = vsel %vm246, 1, 0
    %v311 = vsel %vm247, 1, 0
    %v312 = vsel %vm248, 1, 0
    %v313 = vsel %vm249, 1, 0
    %v314 = vsel %vm250, 1, 0
    %v315 = vsel %vm251, 1, 0
    %v316 = vsel %vm252, 1, 0
    %v317 = vsel %vm253, 1, 0
    %v318 = vsel %vm254, 1, 0
    %v319 = vsel %vm255, 1, 0
    %v320 = vsel %vm256, 1, 0
    %v321 = vsel %vm257, 1, 0
    %v322 = vsel %vm258, 1, 0
    %v323 = vsel %vm259, 1, 0
    %v324 = vsel %vm260, 1, 0
    %v325 = vsel %vm261, 1, 0
    %v326 = vsel %vm262, 1, 0
    %v327 = vsel %vm263, 1, 0
    %v328 = vsel %vm264, 1, 0
    %v329 = vsel %vm265, 1, 0
    %v330 = vsel %vm266, 1, 0
    %v331 = vsel %vm267, 1, 0
    %v332 = vsel %vm268, 1, 0
    %v333 = vsel %vm269, 1, 0
    %v334 = vsel %vm270, 1, 0
    %v335 = vsel %vm271, 1, 0
    %v336 = vsel %vm272, 1, 0
    %v337 = vsel %vm273, 1, 0
    %v338 = vsel %vm274, 1, 0
    %v339 = vsel %vm275, 1, 0
    %v340 = vsel %vm276, 1, 0
    %v341 = vsel %vm277, 1, 0
    %v342 = vsel %vm278, 1, 0
    %v343 = vsel %vm279, 1, 0
    %v344 = vsel %vm280, 1, 0
    %v345 = vsel %vm281, 1, 0
    %v346 = vsel %vm282, 1, 0
    %v347 = vsel %vm283, 1, 0
    %v348 = vsel %vm284, 1, 0
    %v349 = vsel %vm285, 1, 0
    %v350 = vsel %vm286, 1, 0
    %v351 = vsel %vm287, 1, 0
    %v352 = vsel %vm288, 1, 0
    %v353 = vsel %vm289, 1, 0
    %v354 = vsel %vm290, 1, 0
    %v355 = vsel %vm291, 1, 0
    %v356 = vsel %vm292, 1, 0
    %v357 = vsel %vm293, 1, 0
    %v358 = vsel %vm294, 1, 0
    %v359 = vsel %vm295, 1, 0
    %v360 = vsel %vm296, 1, 0
    %v361 = vsel %vm297, 1, 0
    %v362 = vsel %vm298, 1, 0
    %v363 = vsel %vm299, 1, 0
    %v364 = vcvt.s32.f32 %v300
    %v365 = vcvt.s32.f32 %v301
    %v366 = vcvt.s32.f32 %v302
    %v367 = vcvt.s32.f32 %v303
    %v368 = vcvt.s32.f32 %v304
    %v369 = vcvt.s32.f32 %v305
    %v370 = vcvt.s32.f32 %v306
    %v371 = vcvt.s32.f32 %v307
    %v372 = vcvt.s32.f32 %v308
    %v373 = vcvt.s32.f32 %v309
    %v374 = vcvt.s32.f32 %v310
    %v375 = vcvt.s32.f32 %v311
    %v376 = vcvt.s32.f32 %v312
    %v377 = vcvt.s32.f32 %v313
    %v378 = vcvt.s32.f32 %v314
    %v379 = vcvt.s32.f32 %v315
    %v380 = vcvt.s32.f32 %v316
    %v381 = vcvt.s32.f32 %v317
    %v382 = vcvt.s32.f32 %v318
    %v383 = vcvt.s32.f32 %v319
    %v384 = vcvt.s32.f32 %v320
    %v385 = vcvt.s32.f32 %v321
    %v386 = vcvt.s32.f32 %v322
    %v387 = vcvt.s32.f32 %v323
    %v388 = vcvt.s32.f32 %v324
    %v389 = vcvt.s32.f32 %v325
    %v390 = vcvt.s32.f32 %v326
    %v391 = vcvt.s32.f32 %v327
    %v392 = vcvt.s32.f32 %v328
    %v393 = vcvt.s32.f32 %v329
    %v394 = vcvt.s32.f32 %v330
    %v395 = vcvt.s32.f32 %v331
    %v396 = vcvt.s32.f32 %v332
    %v397 = vcvt.s32.f32 %v333
    %v398 = vcvt.s32.f32 %v334
    %v399 = vcvt.s32.f32 %v335
    %v400 = vcvt.s32.f32 %v336
    %v401 = vcvt.s32.f32 %v337
    %v402 = vcvt.s32.f32 %v338
    %v403 = vcvt.s32.f32 %v339
    %v404 = vcvt.s32.f32 %v340
    %v405 = vcvt.s32.f32 %v341
    %v406 = vcvt.s32.f32 %v342
    %v407 = vcvt.s32.f32 %v343
    %v408 = vcvt.s32.f32 %v344
    %v409 = vcvt.s32.f32 %v345
    %v410 = vcvt.s32.f32 %v346
    %v411 = vcvt.s32.f32 %v347
    %v412 = vcvt.s32.f32 %v348
    %v413 = vcvt.s32.f32 %v349
    %v414 = vcvt.s32.f32 %v350
    %v415 = vcvt.s32.f32 %v351
    %v416 = vcvt.s32.f32 %v352
    %v417 = vcvt.s32.f32 %v353
    %v418 = vcvt.s32.f32 %v354
    %v419 = vcvt.s32.f32 %v355
    %v420 = vcvt.s32.f32 %v356
    %v421 = vcvt.s32.f32 %v357
    %v422 = vcvt.s32.f32 %v358
    %v423 = vcvt.s32.f32 %v359
    %v424 = vcvt.s32.f32 %v360
    %v425 = vcvt.s32.f32 %v361
    %v426 = vcvt.s32.f32 %v362
    %v427 = vcvt.s32.f32 %v363
    %v428 = vadd.f32 %v364, %v366
    %v429 = vrot.slane %v428, 4
    %v430 = vadd.f32 %v428, %v429
    %v431 = vrot.slane %v430, 2
    %v432 = vadd.f32 %v430, %v431
    %v433 = vrot.slane %v432, 1
    %v434 = vadd.f32 %v432, %v433
    %v435 = vadd.f32 %v365, %v367
    %v436 = vrot.slane %v435, 4
    %v437 = vadd.f32 %v435, %v436
    %v438 = vrot.slane %v437, 2
    %v439 = vadd.f32 %v437, %v438
    %v440 = vrot.slane %v439, 1
    %v441 = vadd.f32 %v439, %v440
    %v442 = vadd.f32 %v368, %v370
    %v443 = vrot.slane %v442, 4
    %v444 = vadd.f32 %v442, %v443
    %v445 = vrot.slane %v444, 2
    %v446 = vadd.f32 %v444, %v445
    %v447 = vrot.slane %v446, 1
    %v448 = vadd.f32 %v446, %v447
    %v449 = vadd.f32 %v369, %v371
    %v450 = vrot.slane %v449, 4
    %v451 = vadd.f32 %v449, %v450
    %v452 = vrot.slane %v451, 2
    %v453 = vadd.f32 %v451, %v452
    %v454 = vrot.slane %v453, 1
    %v455 = vadd.f32 %v453, %v454
    %v456 = vadd.f32 %v372, %v374
    %v457 = vrot.slane %v456, 4
    %v458 = vadd.f32 %v456, %v457
    %v459 = vrot.slane %v458, 2
    %v460 = vadd.f32 %v458, %v459
    %v461 = vrot.slane %v460, 1
    %v462 = vadd.f32 %v460, %v461
    %v463 = vadd.f32 %v373, %v375
    %v464 = vrot.slane %v463, 4
    %v465 = vadd.f32 %v463, %v464
    %v466 = vrot.slane %v465, 2
    %v467 = vadd.f32 %v465, %v466
    %v468 = vrot.slane %v467, 1
    %v469 = vadd.f32 %v467, %v468
    %v470 = vadd.f32 %v376, %v378
    %v471 = vrot.slane %v470, 4
    %v472 = vadd.f32 %v470, %v471
    %v473 = vrot.slane %v472, 2
    %v474 = vadd.f32 %v472, %v473
    %v475 = vrot.slane %v474, 1
    %v476 = vadd.f32 %v474, %v475
    %v477 = vadd.f32 %v377, %v379
    %v478 = vrot.slane %v477, 4
    %v479 = vadd.f32 %v477, %v478
    %v480 = vrot.slane %v479, 2
    %v481 = vadd.f32 %v479, %v480
    %v482 = vrot.slane %v481, 1
    %v483 = vadd.f32 %v481, %v482
    %v484 = vadd.f32 %v380, %v382
    %v485 = vrot.slane %v484, 4
    %v486 = vadd.f32 %v484, %v485
    %v487 = vrot.slane %v486, 2
    %v488 = vadd.f32 %v486, %v487
    %v489 = vrot.slane %v488, 1
    %v490 = vadd.f32 %v488, %v489
    %v491 = vadd.f32 %v381, %v383
    %v492 = vrot.slane %v491, 4
    %v493 = vadd.f32 %v491, %v492
    %v494 = vrot.slane %v493, 2
    %v495 = vadd.f32 %v493, %v494
    %v496 = vrot.slane %v495, 1
    %v497 = vadd.f32 %v495, %v496
    %v498 = vadd.f32 %v384, %v386
    %v499 = vrot.slane %v498, 4
    %v500 = vadd.f32 %v498, %v499
    %v501 = vrot.slane %v500, 2
    %v502 = vadd.f32 %v500, %v501
    %v503 = vrot.slane %v502, 1
    %v504 = vadd.f32 %v502, %v503
    %v505 = vadd.f32 %v385, %v387
    %v506 = vrot.slane %v505, 4
    %v507 = vadd.f32 %v505, %v506
    %v508 = vrot.slane %v507, 2
    %v509 = vadd.f32 %v507, %v508
    %v510 = vrot.slane %v509, 1
    %v511 = vadd.f32 %v509, %v510
    %v512 = vadd.f32 %v388, %v390
    %v513 = vrot.slane %v512, 4
    %v514 = vadd.f32 %v512, %v513
    %v515 = vrot.slane %v514, 2
    %v516 = vadd.f32 %v514, %v515
    %v517 = vrot.slane %v516, 1
    %v518 = vadd.f32 %v516, %v517
    %v519 = vadd.f32 %v389, %v391
    %v520 = vrot.slane %v519, 4
    %v521 = vadd.f32 %v519, %v520
    %v522 = vrot.slane %v521, 2
    %v523 = vadd.f32 %v521, %v522
    %v524 = vrot.slane %v523, 1
    %v525 = vadd.f32 %v523, %v524
    %v526 = vadd.f32 %v392, %v394
    %v527 = vrot.slane %v526, 4
    %v528 = vadd.f32 %v526, %v527
    %v529 = vrot.slane %v528, 2
    %v530 = vadd.f32 %v528, %v529
    %v531 = vrot.slane %v530, 1
    %v532 = vadd.f32 %v530, %v531
    %v533 = vadd.f32 %v393, %v395
    %v534 = vrot.slane %v533, 4
    %v535 = vadd.f32 %v533, %v534
    %v536 = vrot.slane %v535, 2
    %v537 = vadd.f32 %v535, %v536
    %v538 = vrot.slane %v537, 1
    %v539 = vadd.f32 %v537, %v538
    %v540 = vadd.f32 %v396, %v398
    %v541 = vrot.slane %v540, 4
    %v542 = vadd.f32 %v540, %v541
    %v543 = vrot.slane %v542, 2
    %v544 = vadd.f32 %v542, %v543
    %v545 = vrot.slane %v544, 1
    %v546 = vadd.f32 %v544, %v545
    %v547 = vadd.f32 %v397, %v399
    %v548 = vrot.slane %v547, 4
    %v549 = vadd.f32 %v547, %v548
    %v550 = vrot.slane %v549, 2
    %v551 = vadd.f32 %v549, %v550
    %v552 = vrot.slane %v551, 1
    %v553 = vadd.f32 %v551, %v552
    %v554 = vadd.f32 %v400, %v402
    %v555 = vrot.slane %v554, 4
    %v556 = vadd.f32 %v554, %v555
    %v557 = vrot.slane %v556, 2
    %v558 = vadd.f32 %v556, %v557
    %v559 = vrot.slane %v558, 1
    %v560 = vadd.f32 %v558, %v559
    %v561 = vadd.f32 %v401, %v403
    %v562 = vrot.slane %v561, 4
    %v563 = vadd.f32 %v561, %v562
    %v564 = vrot.slane %v563, 2
    %v565 = vadd.f32 %v563, %v564
    %v566 = vrot.slane %v565, 1
    %v567 = vadd.f32 %v565, %v566
    %v568 = vadd.f32 %v404, %v406
    %v569 = vrot.slane %v568, 4
    %v570 = vadd.f32 %v568, %v569
    %v571 = vrot.slane %v570, 2
    %v572 = vadd.f32 %v570, %v571
    %v573 = vrot.slane %v572, 1
    %v574 = vadd.f32 %v572, %v573
    %v575 = vadd.f32 %v405, %v407
    %v576 = vrot.slane %v575, 4
    %v577 = vadd.f32 %v575, %v576
    %v578 = vrot.slane %v577, 2
    %v579 = vadd.f32 %v577, %v578
    %v580 = vrot.slane %v579, 1
    %v581 = vadd.f32 %v579, %v580
    %v582 = vadd.f32 %v408, %v410
    %v583 = vrot.slane %v582, 4
    %v584 = vadd.f32 %v582, %v583
    %v585 = vrot.slane %v584, 2
    %v586 = vadd.f32 %v584, %v585
    %v587 = vrot.slane %v586, 1
    %v588 = vadd.f32 %v586, %v587
    %v589 = vadd.f32 %v409, %v411
    %v590 = vrot.slane %v589, 4
    %v591 = vadd.f32 %v589, %v590
    %v592 = vrot.slane %v591, 2
    %v593 = vadd.f32 %v591, %v592
    %v594 = vrot.slane %v593, 1
    %v595 = vadd.f32 %v593, %v594
    %v596 = vadd.f32 %v412, %v414
    %v597 = vrot.slane %v596, 4
    %v598 = vadd.f32 %v596, %v597
    %v599 = vrot.slane %v598, 2
    %v600 = vadd.f32 %v598, %v599
    %v601 = vrot.slane %v600, 1
    %v602 = vadd.f32 %v600, %v601
    %v603 = vadd.f32 %v413, %v415
    %v604 = vrot.slane %v603, 4
    %v605 = vadd.f32 %v603, %v604
    %v606 = vrot.slane %v605, 2
    %v607 = vadd.f32 %v605, %v606
    %v608 = vrot.slane %v607, 1
    %v609 = vadd.f32 %v607, %v608
    %v610 = vadd.f32 %v416, %v418
    %v611 = vrot.slane %v610, 4
    %v612 = vadd.f32 %v610, %v611
    %v613 = vrot.slane %v612, 2
    %v614 = vadd.f32 %v612, %v613
    %v615 = vrot.slane %v614, 1
    %v616 = vadd.f32 %v614, %v615
    %v617 = vadd.f32 %v417, %v419
    %v618 = vrot.slane %v617, 4
    %v619 = vadd.f32 %v617, %v618
    %v620 = vrot.slane %v619, 2
    %v621 = vadd.f32 %v619, %v620
    %v622 = vrot.slane %v621, 1
    %v623 = vadd.f32 %v621, %v622
    %v624 = vadd.f32 %v420, %v422
    %v625 = vrot.slane %v624, 4
    %v626 = vadd.f32 %v624, %v625
    %v627 = vrot.slane %v626, 2
    %v628 = vadd.f32 %v626, %v627
    %v629 = vrot.slane %v628, 1
    %v630 = vadd.f32 %v628, %v629
    %v631 = vadd.f32 %v421, %v423
    %v632 = vrot.slane %v631, 4
    %v633 = vadd.f32 %v631, %v632
    %v634 = vrot.slane %v633, 2
    %v635 = vadd.f32 %v633, %v634
    %v636 = vrot.slane %v635, 1
    %v637 = vadd.f32 %v635, %v636
    %v638 = vadd.f32 %v424, %v426
    %v639 = vrot.slane %v638, 4
    %v640 = vadd.f32 %v638, %v639
    %v641 = vrot.slane %v640, 2
    %v642 = vadd.f32 %v640, %v641
    %v643 = vrot.slane %v642, 1
    %v644 = vadd.f32 %v642, %v643
    %v645 = vadd.f32 %v425, %v427
    %v646 = vrot.slane %v645, 4
    %v647 = vadd.f32 %v645, %v646
    %v648 = vrot.slane %v647, 2
    %v649 = vadd.f32 %v647, %v648
    %v650 = vrot.slane %v649, 1
    %v651 = vadd.f32 %v649, %v650
    %v653 = vlaneseq
    %v654 = vshrl.u32 %v653, 7
    %v655 = vsub.s32 0, %v654
    %v656 = vrot.slane %v57, %v655
    %v657 = vlaneseq
    %v658 = vshrl.u32 %v657, 7
    %v659 = vsub.s32 1, %v658
    %v660 = vrot.slane %v57, %v659
    %v663 = vmul.f32 %v434, %v656
    %v664 = vmul.f32 %v441, %v660
    %v665 = vmul.f32 %v448, %v656
    %v666 = vmul.f32 %v455, %v660
    %v667 = vmul.f32 %v462, %v656
    %v668 = vmul.f32 %v469, %v660
    %v669 = vmul.f32 %v476, %v656
    %v670 = vmul.f32 %v483, %v660
    %v671 = vmul.f32 %v490, %v656
    %v672 = vmul.f32 %v497, %v660
    %v673 = vmul.f32 %v504, %v656
    %v674 = vmul.f32 %v511, %v660
    %v675 = vmul.f32 %v518, %v656
    %v676 = vmul.f32 %v525, %v660
    %v677 = vmul.f32 %v532, %v656
    %v678 = vmul.f32 %v539, %v660
    %v679 = vmul.f32 %v546, %v656
    %v680 = vmul.f32 %v553, %v660
    %v681 = vmul.f32 %v560, %v656
    %v682 = vmul.f32 %v567, %v660
    %v683 = vmul.f32 %v574, %v656
    %v684 = vmul.f32 %v581, %v660
    %v685 = vmul.f32 %v588, %v656
    %v686 = vmul.f32 %v595, %v660
    %v687 = vmul.f32 %v602, %v656
    %v688 = vmul.f32 %v609, %v660
    %v689 = vmul.f32 %v616, %v656
    %v690 = vmul.f32 %v623, %v660
    %v691 = vmul.f32 %v630, %v656
    %v692 = vmul.f32 %v637, %v660
    %v693 = vmul.f32 %v644, %v656
    %v694 = vmul.f32 %v651, %v660
    %v695 = vpack.c.bf16 %v663, %v663
    %v696 = vpack.c.bf16 %v664, %v664
    %v697 = vpack.c.bf16 %v665, %v665
    %v698 = vpack.c.bf16 %v666, %v666
    %v699 = vpack.c.bf16 %v667, %v667
    %v700 = vpack.c.bf16 %v668, %v668
    %v701 = vpack.c.bf16 %v669, %v669
    %v702 = vpack.c.bf16 %v670, %v670
    %v703 = vpack.c.bf16 %v671, %v671
    %v704 = vpack.c.bf16 %v672, %v672
    %v705 = vpack.c.bf16 %v673, %v673
    %v706 = vpack.c.bf16 %v674, %v674
    %v707 = vpack.c.bf16 %v675, %v675
    %v708 = vpack.c.bf16 %v676, %v676
    %v709 = vpack.c.bf16 %v677, %v677
    %v710 = vpack.c.bf16 %v678, %v678
    %v711 = vpack.c.bf16 %v679, %v679
    %v712 = vpack.c.bf16 %v680, %v680
    %v713 = vpack.c.bf16 %v681, %v681
    %v714 = vpack.c.bf16 %v682, %v682
    %v715 = vpack.c.bf16 %v683, %v683
    %v716 = vpack.c.bf16 %v684, %v684
    %v717 = vpack.c.bf16 %v685, %v685
    %v718 = vpack.c.bf16 %v686, %v686
    %v719 = vpack.c.bf16 %v687, %v687
    %v720 = vpack.c.bf16 %v688, %v688
    %v721 = vpack.c.bf16 %v689, %v689
    %v722 = vpack.c.bf16 %v690, %v690
    %v723 = vpack.c.bf16 %v691, %v691
    %v724 = vpack.c.bf16 %v692, %v692
    %v725 = vpack.c.bf16 %v693, %v693
    %v726 = vpack.c.bf16 %v694, %v694
    %v759 = vunpack.c.l.b16 %v695
    %v760 = vunpack.c.l.b16 %v696
    %v761 = vunpack.c.l.b16 %v697
    %v762 = vunpack.c.l.b16 %v698
    %v763 = vunpack.c.l.b16 %v699
    %v764 = vunpack.c.l.b16 %v700
    %v765 = vunpack.c.l.b16 %v701
    %v766 = vunpack.c.l.b16 %v702
    %v767 = vunpack.c.l.b16 %v703
    %v768 = vunpack.c.l.b16 %v704
    %v769 = vunpack.c.l.b16 %v705
    %v770 = vunpack.c.l.b16 %v706
    %v771 = vunpack.c.l.b16 %v707
    %v772 = vunpack.c.l.b16 %v708
    %v773 = vunpack.c.l.b16 %v709
    %v774 = vunpack.c.l.b16 %v710
    %v775 = vunpack.c.l.b16 %v711
    %v776 = vunpack.c.l.b16 %v712
    %v777 = vunpack.c.l.b16 %v713
    %v778 = vunpack.c.l.b16 %v714
    %v779 = vunpack.c.l.b16 %v715
    %v780 = vunpack.c.l.b16 %v716
    %v781 = vunpack.c.l.b16 %v717
    %v782 = vunpack.c.l.b16 %v718
    %v783 = vunpack.c.l.b16 %v719
    %v784 = vunpack.c.l.b16 %v720
    %v785 = vunpack.c.l.b16 %v721
    %v786 = vunpack.c.l.b16 %v722
    %v787 = vunpack.c.l.b16 %v723
    %v788 = vunpack.c.l.b16 %v724
    %v789 = vunpack.c.l.b16 %v725
    %v790 = vunpack.c.l.b16 %v726
    %v791 = vrot.slane %v761, 7
    %vm792 = vcmask 1041409
    %v793 = vsel %vm792, %v791, %v759
    %v794 = vrot.slane %v763, 6
    %vm795 = vcmask 1042434
    %v796 = vsel %vm795, %v794, %v793
    %v797 = vrot.slane %v765, 5
    %vm798 = vcmask 1043459
    %v799 = vsel %vm798, %v797, %v796
    %v800 = vrot.slane %v767, 4
    %vm801 = vcmask 1044484
    %v802 = vsel %vm801, %v800, %v799
    %v803 = vrot.slane %v769, 3
    %vm804 = vcmask 1045509
    %v805 = vsel %vm804, %v803, %v802
    %v806 = vrot.slane %v771, 2
    %vm807 = vcmask 1046534
    %v808 = vsel %vm807, %v806, %v805
    %v809 = vrot.slane %v773, 1
    %vm810 = vcmask 1047559
    %v811 = vsel %vm810, %v809, %v808
    %v812 = vrot.slane %v762, 7
    %v813 = vsel %vm792, %v812, %v760
    %v814 = vrot.slane %v764, 6
    %v815 = vsel %vm795, %v814, %v813
    %v816 = vrot.slane %v766, 5
    %v817 = vsel %vm798, %v816, %v815
    %v818 = vrot.slane %v768, 4
    %v819 = vsel %vm801, %v818, %v817
    %v820 = vrot.slane %v770, 3
    %v821 = vsel %vm804, %v820, %v819
    %v822 = vrot.slane %v772, 2
    %v823 = vsel %vm807, %v822, %v821
    %v824 = vrot.slane %v774, 1
    %v825 = vsel %vm810, %v824, %v823
    %v826 = vrot.slane %v777, 7
    %v827 = vsel %vm792, %v826, %v775
    %v828 = vrot.slane %v779, 6
    %v829 = vsel %vm795, %v828, %v827
    %v830 = vrot.slane %v781, 5
    %v831 = vsel %vm798, %v830, %v829
    %v832 = vrot.slane %v783, 4
    %v833 = vsel %vm801, %v832, %v831
    %v834 = vrot.slane %v785, 3
    %v835 = vsel %vm804, %v834, %v833
    %v836 = vrot.slane %v787, 2
    %v837 = vsel %vm807, %v836, %v835
    %v838 = vrot.slane %v789, 1
    %v839 = vsel %vm810, %v838, %v837
    %v840 = vrot.slane %v778, 7
    %v841 = vsel %vm792, %v840, %v776
    %v842 = vrot.slane %v780, 6
    %v843 = vsel %vm795, %v842, %v841
    %v844 = vrot.slane %v782, 5
    %v845 = vsel %vm798, %v844, %v843
    %v846 = vrot.slane %v784, 4
    %v847 = vsel %vm801, %v846, %v845
    %v848 = vrot.slane %v786, 3
    %v849 = vsel %vm804, %v848, %v847
    %v850 = vrot.slane %v788, 2
    %v851 = vsel %vm807, %v850, %v849
    %v852 = vrot.slane %v790, 1
    %v853 = vsel %vm810, %v852, %v851
    %v854 = vpack.c.b16 %v839, %v811
    %v855 = vpack.c.b16 %v853, %v825
    %s858 = smul.u32 0, 2
    %s859 = smul.addr %s858, 8
    %s860 = scalar_lea.vmem [#allocation2], %s859
    %861 = vst [vmem:[%s860] sm:$0xff] %v854
    %862 = vst [vmem:[%s860 + $0x8] sm:$0xff] %v855
    %v863 = vld [vmem:[#allocation8] sm:$0xff]
    %v864 = vld [vmem:[#allocation8 + $0x8] sm:$0xff]
    %v865 = vld [vmem:[#allocation2] sm:$0xff]
    %v866 = vld [vmem:[#allocation2 + $0x8] sm:$0xff]
    %v867 = vld [vmem:[#allocation6] sm:$0xf]
    %v868 = vld [vmem:[#allocation6 + $0x4] sm:$0xf]
    %v869 = vld [vmem:[#allocation6 + $0x8] sm:$0xf]
    %v870 = vld [vmem:[#allocation6 + $0xc] sm:$0xf]
    %v871 = vld [vmem:[#allocation6 + $0x10] sm:$0xf]
    %v872 = vld [vmem:[#allocation6 + $0x14] sm:$0xf]
    %v873 = vld [vmem:[#allocation6 + $0x18] sm:$0xf]
    %v874 = vld [vmem:[#allocation6 + $0x1c] sm:$0xf]
    %v875 = vld [vmem:[#allocation6 + $0x20] sm:$0xf]
    %v876 = vld [vmem:[#allocation6 + $0x24] sm:$0xf]
    %v877 = vld [vmem:[#allocation6 + $0x28] sm:$0xf]
    %v878 = vld [vmem:[#allocation6 + $0x2c] sm:$0xf]
    %v879 = vld [vmem:[#allocation6 + $0x30] sm:$0xf]
    %v880 = vld [vmem:[#allocation6 + $0x34] sm:$0xf]
    %v881 = vld [vmem:[#allocation6 + $0x38] sm:$0xf]
    %v882 = vld [vmem:[#allocation6 + $0x3c] sm:$0xf]
    %v883 = vld [vmem:[#allocation6 + $0x40] sm:$0xf]
    %v884 = vld [vmem:[#allocation6 + $0x44] sm:$0xf]
    %v885 = vld [vmem:[#allocation6 + $0x48] sm:$0xf]
    %v886 = vld [vmem:[#allocation6 + $0x4c] sm:$0xf]
    %v887 = vld [vmem:[#allocation6 + $0x50] sm:$0xf]
    %v888 = vld [vmem:[#allocation6 + $0x54] sm:$0xf]
    %v889 = vld [vmem:[#allocation6 + $0x58] sm:$0xf]
    %v890 = vld [vmem:[#allocation6 + $0x5c] sm:$0xf]
    %v891 = vld [vmem:[#allocation6 + $0x60] sm:$0xf]
    %v892 = vld [vmem:[#allocation6 + $0x64] sm:$0xf]
    %v893 = vld [vmem:[#allocation6 + $0x68] sm:$0xf]
    %v894 = vld [vmem:[#allocation6 + $0x6c] sm:$0xf]
    %v895 = vld [vmem:[#allocation6 + $0x70] sm:$0xf]
    %v896 = vld [vmem:[#allocation6 + $0x74] sm:$0xf]
    %v897 = vld [vmem:[#allocation6 + $0x78] sm:$0xf]
    %v898 = vld [vmem:[#allocation6 + $0x7c] sm:$0xf]
    %v931 = vunpack.c.l.b16 %v867
    %v932 = vunpack.c.l.b16 %v868
    %v933 = vunpack.c.l.b16 %v869
    %v934 = vunpack.c.l.b16 %v870
    %v935 = vunpack.c.l.b16 %v871
    %v936 = vunpack.c.l.b16 %v872
    %v937 = vunpack.c.l.b16 %v873
    %v938 = vunpack.c.l.b16 %v874
    %v939 = vunpack.c.l.b16 %v875
    %v940 = vunpack.c.l.b16 %v876
    %v941 = vunpack.c.l.b16 %v877
    %v942 = vunpack.c.l.b16 %v878
    %v943 = vunpack.c.l.b16 %v879
    %v944 = vunpack.c.l.b16 %v880
    %v945 = vunpack.c.l.b16 %v881
    %v946 = vunpack.c.l.b16 %v882
    %v947 = vunpack.c.l.b16 %v883
    %v948 = vunpack.c.l.b16 %v884
    %v949 = vunpack.c.l.b16 %v885
    %v950 = vunpack.c.l.b16 %v886
    %v951 = vunpack.c.l.b16 %v887
    %v952 = vunpack.c.l.b16 %v888
    %v953 = vunpack.c.l.b16 %v889
    %v954 = vunpack.c.l.b16 %v890
    %v955 = vunpack.c.l.b16 %v891
    %v956 = vunpack.c.l.b16 %v892
    %v957 = vunpack.c.l.b16 %v893
    %v958 = vunpack.c.l.b16 %v894
    %v959 = vunpack.c.l.b16 %v895
    %v960 = vunpack.c.l.b16 %v896
    %v961 = vunpack.c.l.b16 %v897
    %v962 = vunpack.c.l.b16 %v898
    %v963 = vpack.c.b16 %v932, %v931
    %v964 = vpack.c.b16 %v934, %v933
    %v965 = vpack.c.b16 %v936, %v935
    %v966 = vpack.c.b16 %v938, %v937
    %v967 = vpack.c.b16 %v940, %v939
    %v968 = vpack.c.b16 %v942, %v941
    %v969 = vpack.c.b16 %v944, %v943
    %v970 = vpack.c.b16 %v946, %v945
    %v971 = vpack.c.b16 %v948, %v947
    %v972 = vpack.c.b16 %v950, %v949
    %v973 = vpack.c.b16 %v952, %v951
    %v974 = vpack.c.b16 %v954, %v953
    %v975 = vpack.c.b16 %v956, %v955
    %v976 = vpack.c.b16 %v958, %v957
    %v977 = vpack.c.b16 %v960, %v959
    %v978 = vpack.c.b16 %v962, %v961
    %995 = vmatprep.subr.bf16.mxu0 0
    %996 = vmatpush1.bf16.msra.mxu0 %v963
    %997 = vmatprep.subr.bf16.mxu0 0
    %998 = vmatpush1.bf16.msra.mxu0 %v964
    %999 = vmatprep.subr.bf16.mxu0 0
    %1000 = vmatpush1.bf16.msra.mxu0 %v965
    %1001 = vmatprep.subr.bf16.mxu0 0
    %1002 = vmatpush1.bf16.msra.mxu0 %v966
    %1003 = vmatprep.subr.bf16.mxu0 0
    %1004 = vmatpush1.bf16.msra.mxu0 %v967
    %1005 = vmatprep.subr.bf16.mxu0 0
    %1006 = vmatpush1.bf16.msra.mxu0 %v968
    %1007 = vmatprep.subr.bf16.mxu0 0
    %1008 = vmatpush1.bf16.msra.mxu0 %v969
    %1009 = vmatprep.subr.bf16.mxu0 0
    %1010 = vmatpush1.bf16.msra.mxu0 %v970
    %1011 = vmatprep.subr.bf16.mxu0 0
    %1012 = vmatpush1.bf16.msra.mxu0 %v971
    %1013 = vmatprep.subr.bf16.mxu0 0
    %1014 = vmatpush1.bf16.msra.mxu0 %v972
    %1015 = vmatprep.subr.bf16.mxu0 0
    %1016 = vmatpush1.bf16.msra.mxu0 %v973
    %1017 = vmatprep.subr.bf16.mxu0 0
    %1018 = vmatpush1.bf16.msra.mxu0 %v974
    %1019 = vmatprep.subr.bf16.mxu0 0
    %1020 = vmatpush1.bf16.msra.mxu0 %v975
    %1021 = vmatprep.subr.bf16.mxu0 0
    %1022 = vmatpush1.bf16.msra.mxu0 %v976
    %1023 = vmatprep.subr.bf16.mxu0 0
    %1024 = vmatpush1.bf16.msra.mxu0 %v977
    %1025 = vmatprep.subr.bf16.mxu0 0
    %1026 = vmatpush1.bf16.msra.mxu0 %v978
    %1027 = vmatprep.mubr.bf16.mxu0 %v866
    %1028 = vmatmul.mubr.bf16.gmra.mrb[0].mxu0 %v865
    %v1029 = vpop.f32.mrb[0].mxu0
    %v1030 = vadd.f32 0.0, %v1029
    %v1031 = vpop.f32.mrb[0].mxu0
    %v1032 = vpop.f32.mrb[0].mxu0
    %v1033 = vadd.f32 0.0, %v1032
    %v1034 = vpop.f32.mrb[0].mxu0
    %1035 = vdwg.mxu0
    %v1036 = vadd.f32 %v863, %v1030
    %v1037 = vadd.f32 %v864, %v1033
    %1038 = vst [vmem:[#allocation8] sm:$0xff] %v1036
    %1039 = vst [vmem:[#allocation8 + $0x8] sm:$0xff] %v1037
    // Predicated region
    $region26: #{tpu_custom_call.1} parent=1 // pred_check
      _
    $region27: #{tpu_custom_call.1} parent=1 // pred_check_branch
      %1041 = sbr.rel (0) target = $region29
    $region28: #{tpu_custom_call.1} parent=1 // pred_region
      %s1043 = ssub.s32 256, 256
      %1044 = vsyncadd [#allocation5], %s1043
      %s1045 = sshll.u32 [#allocation8], 4
      %s1046 = int_to_ptr.vmem [resolvable:$true] %s1045
      %1051 = dma.vmem_to_hbm [thread:$0]  %s1046, 256, %s3, [#allocation5], 128, 128, 8
    $region29: #{tpu_custom_call.1} parent=1 // pred_fallthru
      _
    // Predicated region
    $region30: #{tpu_custom_call.1} parent=1 // pred_check
      _
    $region31: #{tpu_custom_call.1} parent=1 // pred_check_branch
      %1053 = sbr.rel (0) target = $region33
    $region32: #{tpu_custom_call.1} parent=1 // pred_region
      %1054 = dma.done [#allocation5], 256
    $region33: #{tpu_custom_call.1} parent=1 // pred_fallthru
      _
    %1055 = vsyncpa [#allocation4], 1
    %1056 = vsyncpa [#allocation7], 1
    %1057 = vsyncpa [#allocation5], 1

</llo_original>
